<compile_context>
chip_gen: v6e
topology: v6e:2x2x1
jax: 0.10.0
libtpu: 0.0.40
codegen_flags: <defaults>
</compile_context>

<pallas_src>
import jax
import jax.numpy as jnp
from jax import lax
from jax.experimental import pallas as pl
from jax.experimental.pallas import tpu as pltpu

_INV_SQRT2 = 0.7071067811865476
_SQRT_2_OVER_PI = 0.7978845608028654


def _gelu_exact(x):
    # PyTorch nn.GELU() default (approximate='none'): 0.5 * x * (1 + erf(x / sqrt(2)))
    return 0.5 * x * (1.0 + lax.erf(x * _INV_SQRT2))


def _gelu_tanh(x):
    # approximate='tanh' variant: tanh runs on the EUP slot instead of the VALU erf polynomial.
    return 0.5 * x * (1.0 + jnp.tanh(_SQRT_2_OVER_PI * (x + 0.044715 * x * x * x)))


def _cdiv(a, b):
    return -(-a // b)


def _round_up(n, m):
    return _cdiv(n, m) * m


def _num_tensorcores():
    """Best-effort TensorCore count (2 on v7x, 1 on v5e/v6e). Conservative default: 1."""
    try:
        info = pltpu.get_tpu_info()
        for attr in ("num_cores", "num_tensorcores", "tensorcore_count", "core_count"):
            v = getattr(info, attr, None)
            if isinstance(v, int) and v > 0:
                return v
    except Exception:
        pass
    return 1


def _make_mlp_kernel(n_layers, compute_dtype, approximate_gelu):
    """Kernel for n_layers Linear layers: GELU between layers, Sigmoid at the end."""
    gelu = _gelu_tanh if approximate_gelu else _gelu_exact

    def kernel(*refs):
        x_ref = refs[0]
        o_ref = refs[-1]
        wb_refs = refs[1:-1]  # (w1, b1, w2, b2, ..., wn, bn)

        h = x_ref[...]
        for l in range(n_layers):
            w_ref = wb_refs[2 * l]
            b_ref = wb_refs[2 * l + 1]
            # bf16 (or f32) operands into the MXU, f32 accumulation.
            h = jnp.dot(h.astype(w_ref.dtype), w_ref[...],
                        preferred_element_type=jnp.float32)
            h = h + b_ref[...]                       # bias add in f32
            if l < n_layers - 1:
                # GELU in f32; keep the inter-layer activation in the compute dtype to halve
                # the live-range bytes for large batch tiles (no-op for the f32 path).
                h = gelu(h).astype(compute_dtype)
        o_ref[...] = jax.nn.sigmoid(h).astype(o_ref.dtype)

    return kernel


def make_base_classifier(params, *, use_bf16=True, batch_tile=512,
                         approximate_gelu=False, split_for_megacore=None):
    """Pad/cast the weights once and return a jitted forward(x) for BaseClassifier."""
    n_layers = len(params)
    d_in = params[0][0].shape[0]
    dims = [d_in] + [w.shape[1] for (w, _) in params]       # logical widths
    dims_p = [_round_up(d, 128) for d in dims]               # lane-padded widths
    d_out, d_out_p = dims[-1], dims_p[-1]
    compute_dtype = jnp.bfloat16 if use_bf16 else jnp.float32
    bt_unit = 16 if use_bf16 else 8                           # bf16 packs 2 rows / sublane

    if split_for_megacore is None:
        split_for_megacore = _num_tensorcores() >= 2

    def pad2(a, rows, cols, dtype):
        a = jnp.asarray(a, jnp.float32)
        a = jnp.pad(a, ((0, rows - a.shape[0]), (0, cols - a.shape[1])))
        return a.astype(dtype)

    # ---- Hoisted: pad + cast weights/biases ONCE (not per forward call). ----
    weights, biases = [], []
    for l, (w, b) in enumerate(params):
        weights.append(pad2(w, dims_p[l], dims_p[l + 1], compute_dtype))
        biases.append(pad2(jnp.asarray(b, jnp.float32).reshape(1, -1),
                           1, dims_p[l + 1], jnp.float32))
    flat_wb = []
    for l in range(n_layers):
        flat_wb.append(weights[l])
        flat_wb.append(biases[l])
    flat_wb = tuple(flat_wb)

    weight_bytes = sum(int(w.size) * w.dtype.itemsize for w in weights)  # Buffered(1): 1 copy
    bias_bytes = sum(int(b.size) * b.dtype.itemsize for b in biases)
    # TODO(synk): if weight_bytes exceeds ~24-28 MiB (v7x has only 64 MiB VMEM per TC), tile the
    # widest layer's N dimension over an extra grid axis instead of keeping it whole-array
    # resident; the shapes used here are far below that threshold.

    @jax.jit
    def _fwd(x, *wb):
        B = x.shape[0]

        # Batch-tile selection: multiple of the packed-row unit, big enough to amortize the
        # ~0.35us grid-step overhead and under-filled 256x256 MXU pushes; only force >=2 grid
        # blocks when megacore (2 TCs) can actually use them.
        bt = min(batch_tile, _round_up(B, bt_unit))
        bt = max(bt_unit, _round_up(bt, bt_unit))
        if split_for_megacore and B > bt_unit and _cdiv(B, bt) < 2:
            bt = max(bt_unit, _round_up(_cdiv(B, 2), bt_unit))
        B_p = _round_up(B, bt)
        grid = (B_p // bt,)

        # Per-call x padding (exact: padded columns are zero, padded rows sliced off below).
        x_p = jnp.pad(x.astype(jnp.float32),
                      ((0, B_p - B), (0, dims_p[0] - d_in))).astype(compute_dtype)

        # Scoped-VMEM budget from the actual footprint (+25% / +4 MiB headroom), clamped to a
        # cap that is safe on v5e/v6e (128 MiB) and v7x (64 MiB/TC).
        itemsize = jnp.dtype(compute_dtype).itemsize
        x_blk = bt * dims_p[0] * itemsize * 3
        out_blk = bt * d_out_p * 4 * 2
        act_scratch = bt * max(dims_p) * 4 * 2
        vmem_limit = int(1.25 * (weight_bytes + bias_bytes + x_blk + out_blk + act_scratch))
        vmem_limit = max(min(vmem_limit + (4 << 20), 56 << 20), 16 << 20)

        def wspec(shape):
            # Whole-array block, constant index_map (fetched once, VMEM-resident). Single
            # buffer: these blocks are never re-fetched, so double-buffering is pure waste.
            return pl.BlockSpec(shape, lambda i: (0, 0), pipeline_mode=pl.Buffered(1))

        if grid[0] >= 3:
            x_spec = pl.BlockSpec((bt, dims_p[0]), lambda i: (i, 0),
                                  pipeline_mode=pl.Buffered(3))
        else:
            x_spec = pl.BlockSpec((bt, dims_p[0]), lambda i: (i, 0))

        in_specs = [x_spec]
        for l in range(n_layers):
            in_specs.append(wspec((dims_p[l], dims_p[l + 1])))
            in_specs.append(wspec((1, dims_p[l + 1])))

        flops = 2 * B_p * sum(dims_p[l] * dims_p[l + 1] for l in range(n_layers))
        transcendentals = B_p * sum(dims_p[1:])
        bytes_accessed = (sum(int(a.size) * a.dtype.itemsize for a in wb)
                          + int(x_p.size) * itemsize + B_p * d_out_p * 4)

        out_p = pl.pallas_call(
            _make_mlp_kernel(n_layers, compute_dtype, approximate_gelu),
            out_shape=jax.ShapeDtypeStruct((B_p, d_out_p), jnp.float32),
            grid_spec=pltpu.PrefetchScalarGridSpec(
                num_scalar_prefetch=0,
                grid=grid,
                in_specs=in_specs,
                out_specs=pl.BlockSpec((bt, d_out_p), lambda i: (i, 0)),
            ),
            compiler_params=pltpu.CompilerParams(
                dimension_semantics=("parallel",),
                vmem_limit_bytes=vmem_limit),
            cost_estimate=pl.CostEstimate(
                flops=int(flops),
                transcendentals=int(transcendentals),
                bytes_accessed=int(bytes_accessed)),
        )(x_p, *wb)

        # Drop batch-row padding and lane padding; padded rows/cols never leak out.
        return out_p[:B, :d_out].astype(x.dtype)

    def forward(x):
        return _fwd(x, *flat_wb)

    return forward


def init_params(key, input_size, hidden_size, output_size):
    """Deterministic synthetic init matching the module's layer shapes."""
    dims = [input_size] + list(hidden_size) + [output_size]
    params = []
    for i in range(len(dims) - 1):
        key, kw, kb = jax.random.split(key, 3)
        fan_in, fan_out = dims[i], dims[i + 1]
        bound = 1.0 / jnp.sqrt(fan_in)
        w = jax.random.uniform(kw, (fan_in, fan_out), jnp.float32, -bound, bound)
        b = jax.random.uniform(kb, (1, fan_out), jnp.float32, -bound, bound)
        params.append((w, b))
    return params


def reference_forward(x, params):
    h = x
    for l, (w, b) in enumerate(params):
        h = h @ w + b
        if l < len(params) - 1:
            h = _gelu_exact(h)
    return jax.nn.sigmoid(h)


if __name__ == "__main__":
    # Small shapes consistent with the module: batch=16, input=32, hidden=[64, 48], output=8
    input_size, hidden_size, output_size = 32, (64, 48), 8
    B = 16

    key = jax.random.PRNGKey(0)
    key, kx = jax.random.split(key)
    x = jax.random.normal(kx, (B, input_size), dtype=jnp.float32)
    params = init_params(key, input_size, hidden_size, output_size)

    ref = reference_forward(x, params)

    # Exact path (f32 operands) — must match the reference tightly.
    fwd_f32 = make_base_classifier(params, use_bf16=False)
    out_f32 = jax.block_until_ready(fwd_f32(x))
    assert out_f32.shape == (B, output_size)
    assert jnp.allclose(out_f32, ref, atol=1e-5, rtol=1e-5), "f32 mismatch vs reference"

    # Fast path (bf16 operands, f32 accumulation) — relaxed tolerance.
    fwd_bf16 = make_base_classifier(params, use_bf16=True)
    out_bf16 = jax.block_until_ready(fwd_bf16(x))
    assert out_bf16.shape == (B, output_size)
    assert jnp.allclose(out_bf16, ref, atol=2e-2, rtol=2e-2), "bf16 mismatch vs reference"

    # Second call re-uses the already-padded weights (no per-call pad/cast of params).
    out_again = jax.block_until_ready(fwd_bf16(x))
    assert jnp.allclose(out_again, out_bf16)

    print("KERNEL_OK")
</pallas_src>

<mosaic_0001>
module attributes {stable_mosaic.version = 11 : i64} {
  func.func @kernel(%arg0: i32, %arg1: memref<16x128xf32, #tpu.memory_space<vmem>>, %arg2: memref<128x128xf32, #tpu.memory_space<vmem>>, %arg3: memref<1x128xf32, #tpu.memory_space<vmem>>, %arg4: memref<128x128xf32, #tpu.memory_space<vmem>>, %arg5: memref<1x128xf32, #tpu.memory_space<vmem>>, %arg6: memref<128x128xf32, #tpu.memory_space<vmem>>, %arg7: memref<1x128xf32, #tpu.memory_space<vmem>>, %arg8: memref<16x128xf32, #tpu.memory_space<vmem>>) attributes {dimension_semantics = [#tpu.dimension_semantics<parallel>], iteration_bounds = array<i64: 1>, scalar_prefetch = 0 : i64, scratch_operands = 0 : i64, tpu.core_type = #tpu.core_type<tc>, window_params = [{transform_indices = @transform_0, window_bounds = array<i64: 16, 128>}, {pipeline_mode = #tpu.pipeline_mode<synchronous>, transform_indices = @transform_1, window_bounds = array<i64: 128, 128>}, {pipeline_mode = #tpu.pipeline_mode<synchronous>, transform_indices = @transform_2, window_bounds = array<i64: 1, 128>}, {pipeline_mode = #tpu.pipeline_mode<synchronous>, transform_indices = @transform_3, window_bounds = array<i64: 128, 128>}, {pipeline_mode = #tpu.pipeline_mode<synchronous>, transform_indices = @transform_4, window_bounds = array<i64: 1, 128>}, {pipeline_mode = #tpu.pipeline_mode<synchronous>, transform_indices = @transform_5, window_bounds = array<i64: 128, 128>}, {pipeline_mode = #tpu.pipeline_mode<synchronous>, transform_indices = @transform_6, window_bounds = array<i64: 1, 128>}, {transform_indices = @transform_7, window_bounds = array<i64: 16, 128>}]} {
    %c0 = arith.constant 0 : index
    %c0_0 = arith.constant 0 : index
    %0 = vector.load %arg1[%c0, %c0_0] : memref<16x128xf32, #tpu.memory_space<vmem>>, vector<16x128xf32>
    %c0_1 = arith.constant 0 : index
    %c0_2 = arith.constant 0 : index
    %1 = vector.load %arg2[%c0_1, %c0_2] : memref<128x128xf32, #tpu.memory_space<vmem>>, vector<128x128xf32>
    %cst = arith.constant dense<0.000000e+00> : vector<16x128xf32>
    %2 = tpu.matmul %0, %1, %cst {dimension_numbers = #tpu.dot_dimension_numbers<[1], [0], [0], [1], [0, 0, 1, 1], [], []>} : vector<16x128xf32>, vector<128x128xf32>, vector<16x128xf32> -> vector<16x128xf32>
    %c0_3 = arith.constant 0 : index
    %c0_4 = arith.constant 0 : index
    %3 = vector.load %arg3[%c0_3, %c0_4] : memref<1x128xf32, #tpu.memory_space<vmem>>, vector<1x128xf32>
    %4 = vector.broadcast %3 : vector<1x128xf32> to vector<16x128xf32>
    %5 = arith.addf %2, %4 : vector<16x128xf32>
    %cst_5 = arith.constant 5.000000e-01 : f32
    %6 = vector.broadcast %cst_5 : f32 to vector<16x128xf32>
    %7 = arith.mulf %6, %5 : vector<16x128xf32>
    %cst_6 = arith.constant 0.707106769 : f32
    %8 = vector.broadcast %cst_6 : f32 to vector<16x128xf32>
    %9 = arith.mulf %5, %8 : vector<16x128xf32>
    %10 = math.erf %9 : vector<16x128xf32>
    %cst_7 = arith.constant 1.000000e+00 : f32
    %11 = vector.broadcast %cst_7 : f32 to vector<16x128xf32>
    %12 = arith.addf %11, %10 : vector<16x128xf32>
    %13 = arith.mulf %7, %12 : vector<16x128xf32>
    %c0_8 = arith.constant 0 : index
    %c0_9 = arith.constant 0 : index
    %14 = vector.load %arg4[%c0_8, %c0_9] : memref<128x128xf32, #tpu.memory_space<vmem>>, vector<128x128xf32>
    %cst_10 = arith.constant dense<0.000000e+00> : vector<16x128xf32>
    %15 = tpu.matmul %13, %14, %cst_10 {dimension_numbers = #tpu.dot_dimension_numbers<[1], [0], [0], [1], [0, 0, 1, 1], [], []>} : vector<16x128xf32>, vector<128x128xf32>, vector<16x128xf32> -> vector<16x128xf32>
    %c0_11 = arith.constant 0 : index
    %c0_12 = arith.constant 0 : index
    %16 = vector.load %arg5[%c0_11, %c0_12] : memref<1x128xf32, #tpu.memory_space<vmem>>, vector<1x128xf32>
    %17 = vector.broadcast %16 : vector<1x128xf32> to vector<16x128xf32>
    %18 = arith.addf %15, %17 : vector<16x128xf32>
    %cst_13 = arith.constant 5.000000e-01 : f32
    %19 = vector.broadcast %cst_13 : f32 to vector<16x128xf32>
    %20 = arith.mulf %19, %18 : vector<16x128xf32>
    %cst_14 = arith.constant 0.707106769 : f32
    %21 = vector.broadcast %cst_14 : f32 to vector<16x128xf32>
    %22 = arith.mulf %18, %21 : vector<16x128xf32>
    %23 = math.erf %22 : vector<16x128xf32>
    %cst_15 = arith.constant 1.000000e+00 : f32
    %24 = vector.broadcast %cst_15 : f32 to vector<16x128xf32>
    %25 = arith.addf %24, %23 : vector<16x128xf32>
    %26 = arith.mulf %20, %25 : vector<16x128xf32>
    %c0_16 = arith.constant 0 : index
    %c0_17 = arith.constant 0 : index
    %27 = vector.load %arg6[%c0_16, %c0_17] : memref<128x128xf32, #tpu.memory_space<vmem>>, vector<128x128xf32>
    %cst_18 = arith.constant dense<0.000000e+00> : vector<16x128xf32>
    %28 = tpu.matmul %26, %27, %cst_18 {dimension_numbers = #tpu.dot_dimension_numbers<[1], [0], [0], [1], [0, 0, 1, 1], [], []>} : vector<16x128xf32>, vector<128x128xf32>, vector<16x128xf32> -> vector<16x128xf32>
    %c0_19 = arith.constant 0 : index
    %c0_20 = arith.constant 0 : index
    %29 = vector.load %arg7[%c0_19, %c0_20] : memref<1x128xf32, #tpu.memory_space<vmem>>, vector<1x128xf32>
    %30 = vector.broadcast %29 : vector<1x128xf32> to vector<16x128xf32>
    %31 = arith.addf %28, %30 : vector<16x128xf32>
    %32 = arith.negf %31 : vector<16x128xf32>
    %33 = math.exp %32 : vector<16x128xf32>
    %cst_21 = arith.constant 1.000000e+00 : f32
    %34 = vector.broadcast %cst_21 : f32 to vector<16x128xf32>
    %35 = arith.addf %34, %33 : vector<16x128xf32>
    %36 = arith.divf %34, %35 : vector<16x128xf32>
    %c0_22 = arith.constant 0 : index
    %c0_23 = arith.constant 0 : index
    %37 = vector.load %arg8[%c0_22, %c0_23] : memref<16x128xf32, #tpu.memory_space<vmem>>, vector<16x128xf32>
    tpu.vector_store %arg8[%c0_22, %c0_23], %36 {strides = array<i32>} : memref<16x128xf32, #tpu.memory_space<vmem>>, vector<16x128xf32>,
    return
  }
  func.func @transform_0(%arg0: i32) -> (i32, i32) {
    %c0_i32 = arith.constant 0 : i32
    %c0_i32_0 = arith.constant 0 : i32
    return %arg0, %c0_i32 : i32, i32
  }
  func.func @transform_1(%arg0: i32) -> (i32, i32) {
    %c0_i32 = arith.constant 0 : i32
    %c0_i32_0 = arith.constant 0 : i32
    %c0_i32_1 = arith.constant 0 : i32
    return %c0_i32, %c0_i32_0 : i32, i32
  }
  func.func @transform_2(%arg0: i32) -> (i32, i32) {
    %c0_i32 = arith.constant 0 : i32
    %c0_i32_0 = arith.constant 0 : i32
    %c0_i32_1 = arith.constant 0 : i32
    return %c0_i32, %c0_i32_0 : i32, i32
  }
  func.func @transform_3(%arg0: i32) -> (i32, i32) {
    %c0_i32 = arith.constant 0 : i32
    %c0_i32_0 = arith.constant 0 : i32
    %c0_i32_1 = arith.constant 0 : i32
    return %c0_i32, %c0_i32_0 : i32, i32
  }
  func.func @transform_4(%arg0: i32) -> (i32, i32) {
    %c0_i32 = arith.constant 0 : i32
    %c0_i32_0 = arith.constant 0 : i32
    %c0_i32_1 = arith.constant 0 : i32
    return %c0_i32, %c0_i32_0 : i32, i32
  }
  func.func @transform_5(%arg0: i32) -> (i32, i32) {
    %c0_i32 = arith.constant 0 : i32
    %c0_i32_0 = arith.constant 0 : i32
    %c0_i32_1 = arith.constant 0 : i32
    return %c0_i32, %c0_i32_0 : i32, i32
  }
  func.func @transform_6(%arg0: i32) -> (i32, i32) {
    %c0_i32 = arith.constant 0 : i32
    %c0_i32_0 = arith.constant 0 : i32
    %c0_i32_1 = arith.constant 0 : i32
    return %c0_i32, %c0_i32_0 : i32, i32
  }
  func.func @transform_7(%arg0: i32) -> (i32, i32) {
    %c0_i32 = arith.constant 0 : i32
    %c0_i32_0 = arith.constant 0 : i32
    return %arg0, %c0_i32 : i32, i32
  }
}

</mosaic_0001>

<llo_original>
// kernel: _fwd.1
$region0: #{_fwd.1}
  #allocation0 [shape = 'u32[]', space=smem, size = 0x4, offset = 0x4, fixed_abs, tag = 'smem constant byte address 0x4 - core index']
  #allocation1 [shape = 'u32[144,128]{1,0:T(1,128)}', space=vmem, size = 0x12000, scoped, tag = 'internal scratch']
  %s0 = inlined_call_operand.vmem [shape: f32[16,128], index: 0, kind: input, shape index: {}]
  %s1 = inlined_call_operand.hbm [shape: f32[128,128], index: 1, kind: input, shape index: {}]
  %s2 = inlined_call_operand.vmem [shape: f32[1,128], index: 2, kind: input, shape index: {}]
  %s3 = inlined_call_operand.hbm [shape: f32[128,128], index: 3, kind: input, shape index: {}]
  %s4 = inlined_call_operand.vmem [shape: f32[1,128], index: 4, kind: input, shape index: {}]
  %s5 = inlined_call_operand.hbm [shape: f32[128,128], index: 5, kind: input, shape index: {}]
  %s6 = inlined_call_operand.vmem [shape: f32[1,128], index: 6, kind: input, shape index: {}]
  %s7 = inlined_call_operand.vmem [shape: f32[16,128], index: 7, kind: output, shape index: {}]
  %s8 = sld [smem:[#allocation0]]
  $region50: #{_fwd.1} parent=0
    _
  %s10 = ssub.s32 1, %s8
  %s11 = scalar_select 0, %s10, %s8
  $region1: #{_fwd.1} parent=0
    #allocation2 [shape = 'u8[65536]{0}', space=vmem, size = 0x10000, scoped, tag = 'input window, operand 1, single buffered']
    #allocation3 [shape = 's32[1]{0}', space=sflag, size = 0x4, scoped, tag = 'scoped memory for _fwd.1']
    #allocation4 [shape = 'u8[65536]{0}', space=vmem, size = 0x10000, scoped, tag = 'input window, operand 3, single buffered']
    #allocation5 [shape = 's32[1]{0}', space=sflag, size = 0x4, scoped, tag = 'scoped memory for _fwd.1']
    #allocation6 [shape = 'u8[65536]{0}', space=vmem, size = 0x10000, scoped, tag = 'input window, operand 5, single buffered']
    %12 = vsyncpa [#allocation3], 0
    %13 = vsyncpa [#allocation5], 0
    // Predicated region
    $region2: #{_fwd.1} parent=1 // pred_check
      _
    $region3: #{_fwd.1} parent=1 // pred_check_branch
      %15 = sbr.rel (0) target = $region5
    $region4: #{_fwd.1} parent=1 // pred_region
      _
    $region5: #{_fwd.1} parent=1 // pred_fallthru
      _
    // Predicated region
    $region6: #{_fwd.1} parent=1 // pred_check
      _
    $region7: #{_fwd.1} parent=1 // pred_check_branch
      %17 = sbr.rel (0) target = $region9
    $region8: #{_fwd.1} parent=1 // pred_region
      %s19 = ssub.s32 2048, 2048
      %20 = vsyncadd [#allocation3], %s19
      %s21 = sshll.u32 [#allocation2], 4
      %s22 = int_to_ptr.vmem [resolvable:$true] %s21
      %27 = dma.hbm_to_vmem [thread:$0]  %s1, 2048, %s22, [#allocation3], 128, 128, 8
    $region9: #{_fwd.1} parent=1 // pred_fallthru
      _
    // Predicated region
    $region10: #{_fwd.1} parent=1 // pred_check
      _
    $region11: #{_fwd.1} parent=1 // pred_check_branch
      %29 = sbr.rel (0) target = $region13
    $region12: #{_fwd.1} parent=1 // pred_region
      _
    $region13: #{_fwd.1} parent=1 // pred_fallthru
      _
    // Predicated region
    $region14: #{_fwd.1} parent=1 // pred_check
      _
    $region15: #{_fwd.1} parent=1 // pred_check_branch
      %31 = sbr.rel (0) target = $region17
    $region16: #{_fwd.1} parent=1 // pred_region
      %s33 = ssub.s32 2048, 2048
      %34 = vsyncadd [#allocation5], %s33
      %s35 = sshll.u32 [#allocation4], 4
      %s36 = int_to_ptr.vmem [resolvable:$true] %s35
      %41 = dma.hbm_to_vmem [thread:$0]  %s3, 2048, %s36, [#allocation5], 128, 128, 8
    $region17: #{_fwd.1} parent=1 // pred_fallthru
      _
    // Predicated region
    $region18: #{_fwd.1} parent=1 // pred_check
      _
    $region19: #{_fwd.1} parent=1 // pred_check_branch
      %43 = sbr.rel (0) target = $region21
    $region20: #{_fwd.1} parent=1 // pred_region
      _
    $region21: #{_fwd.1} parent=1 // pred_fallthru
      _
    // Predicated region
    $region22: #{_fwd.1} parent=1 // pred_check
      _
    $region23: #{_fwd.1} parent=1 // pred_check_branch
      %45 = sbr.rel (0) target = $region25
    $region24: #{_fwd.1} parent=1 // pred_region
      %s47 = ssub.s32 2048, 2048
      %48 = vsyncadd [#allocation5], %s47
      %s49 = sshll.u32 [#allocation6], 4
      %s50 = int_to_ptr.vmem [resolvable:$true] %s49
      %55 = dma.hbm_to_vmem [thread:$0]  %s5, 2048, %s50, [#allocation5], 128, 128, 8
    $region25: #{_fwd.1} parent=1 // pred_fallthru
      _
    // Predicated region
    $region26: #{_fwd.1} parent=1 // pred_check
      _
    $region27: #{_fwd.1} parent=1 // pred_check_branch
      %57 = sbr.rel (0) target = $region29
    $region28: #{_fwd.1} parent=1 // pred_region
      _
    $region29: #{_fwd.1} parent=1 // pred_fallthru
      _
    // Predicated region
    $region30: #{_fwd.1} parent=1 // pred_check
      _
    $region31: #{_fwd.1} parent=1 // pred_check_branch
      %59 = sbr.rel (0) target = $region33
    $region32: #{_fwd.1} parent=1 // pred_region
      %60 = dma.done [#allocation3], 2048
    $region33: #{_fwd.1} parent=1 // pred_fallthru
      _
    // Predicated region
    $region34: #{_fwd.1} parent=1 // pred_check
      _
    $region35: #{_fwd.1} parent=1 // pred_check_branch
      %62 = sbr.rel (0) target = $region37
    $region36: #{_fwd.1} parent=1 // pred_region
      %63 = dma.done [#allocation5], 2048
    $region37: #{_fwd.1} parent=1 // pred_fallthru
      _
    // Predicated region
    $region38: #{_fwd.1} parent=1 // pred_check
      _
    $region39: #{_fwd.1} parent=1 // pred_check_branch
      %65 = sbr.rel (0) target = $region41
    $region40: #{_fwd.1} parent=1 // pred_region
      %66 = dma.done [#allocation5], 2048
    $region41: #{_fwd.1} parent=1 // pred_fallthru
      _
    %v67 = vld [vmem:[%s0] sm:$0xff]
    %v68 = vld [vmem:[%s0 + $0x8] sm:$0xff]
    %v69 = vld [vmem:[#allocation2] sm:$0xff]
    %v70 = vld [vmem:[#allocation2 + $0x8] sm:$0xff]
    %v71 = vld [vmem:[#allocation2 + $0x10] sm:$0xff]
    %v72 = vld [vmem:[#allocation2 + $0x18] sm:$0xff]
    %v73 = vld [vmem:[#allocation2 + $0x20] sm:$0xff]
    %v74 = vld [vmem:[#allocation2 + $0x28] sm:$0xff]
    %v75 = vld [vmem:[#allocation2 + $0x30] sm:$0xff]
    %v76 = vld [vmem:[#allocation2 + $0x38] sm:$0xff]
    %v77 = vld [vmem:[#allocation2 + $0x40] sm:$0xff]
    %v78 = vld [vmem:[#allocation2 + $0x48] sm:$0xff]
    %v79 = vld [vmem:[#allocation2 + $0x50] sm:$0xff]
    %v80 = vld [vmem:[#allocation2 + $0x58] sm:$0xff]
    %v81 = vld [vmem:[#allocation2 + $0x60] sm:$0xff]
    %v82 = vld [vmem:[#allocation2 + $0x68] sm:$0xff]
    %v83 = vld [vmem:[#allocation2 + $0x70] sm:$0xff]
    %v84 = vld [vmem:[#allocation2 + $0x78] sm:$0xff]
    %v85 = vld [vmem:[%s2] sm:$0x1]
    %v87 = vlaneseq
    %v88 = vshrl.u32 %v87, 7
    %v89 = vsub.s32 0, %v88
    %v90 = vrot.slane %v85, %v89
    %92 = vmatprep.subr.mxu0 0.0
    %93 = vmatpush1.msra.mxu0 %v84
    %94 = vmatprep.subr.mxu0 0.0
    %95 = vmatpush1.msra.mxu0 %v83
    %96 = vmatprep.subr.mxu0 0.0
    %97 = vmatpush1.msra.mxu0 %v82
    %98 = vmatprep.subr.mxu0 0.0
    %99 = vmatpush1.msra.mxu0 %v81
    %100 = vmatprep.subr.mxu0 0.0
    %101 = vmatpush1.msra.mxu0 %v80
    %102 = vmatprep.subr.mxu0 0.0
    %103 = vmatpush1.msra.mxu0 %v79
    %104 = vmatprep.subr.mxu0 0.0
    %105 = vmatpush1.msra.mxu0 %v78
    %106 = vmatprep.subr.mxu0 0.0
    %107 = vmatpush1.msra.mxu0 %v77
    %108 = vmatprep.subr.mxu0 0.0
    %109 = vmatpush1.msra.mxu0 %v76
    %110 = vmatprep.subr.mxu0 0.0
    %111 = vmatpush1.msra.mxu0 %v75
    %112 = vmatprep.subr.mxu0 0.0
    %113 = vmatpush1.msra.mxu0 %v74
    %114 = vmatprep.subr.mxu0 0.0
    %115 = vmatpush1.msra.mxu0 %v73
    %116 = vmatprep.subr.mxu0 0.0
    %117 = vmatpush1.msra.mxu0 %v72
    %118 = vmatprep.subr.mxu0 0.0
    %119 = vmatpush1.msra.mxu0 %v71
    %120 = vmatprep.subr.mxu0 0.0
    %121 = vmatpush1.msra.mxu0 %v70
    %122 = vmatprep.subr.mxu0 0.0
    %123 = vmatpush1.msra.mxu0 %v69
    %124 = vmatprep.subr.mxu0 0.0
    %125 = vmatpush2.msra.mxu0 0.0
    %126 = vmatprep.subr.mxu0 0.0
    %127 = vmatpush2.msra.mxu0 0.0
    %128 = vmatprep.subr.mxu0 0.0
    %129 = vmatpush2.msra.mxu0 0.0
    %130 = vmatprep.subr.mxu0 0.0
    %131 = vmatpush2.msra.mxu0 0.0
    %132 = vmatprep.subr.mxu0 0.0
    %133 = vmatpush2.msra.mxu0 0.0
    %134 = vmatprep.subr.mxu0 0.0
    %135 = vmatpush2.msra.mxu0 0.0
    %136 = vmatprep.subr.mxu0 0.0
    %137 = vmatpush2.msra.mxu0 0.0
    %138 = vmatprep.subr.mxu0 0.0
    %139 = vmatpush2.msra.mxu0 0.0
    %140 = vmatprep.subr.mxu0 0.0
    %141 = vmatpush2.msra.mxu0 0.0
    %142 = vmatprep.subr.mxu0 0.0
    %143 = vmatpush2.msra.mxu0 0.0
    %144 = vmatprep.subr.mxu0 0.0
    %145 = vmatpush2.msra.mxu0 0.0
    %146 = vmatprep.subr.mxu0 0.0
    %147 = vmatpush2.msra.mxu0 0.0
    %148 = vmatprep.subr.mxu0 0.0
    %149 = vmatpush2.msra.mxu0 0.0
    %150 = vmatprep.subr.mxu0 0.0
    %151 = vmatpush2.msra.mxu0 0.0
    %152 = vmatprep.subr.mxu0 0.0
    %153 = vmatpush2.msra.mxu0 0.0
    %154 = vmatprep.subr.mxu0 0.0
    %155 = vmatpush2.msra.mxu0 0.0
    %156 = vmatprep.mubr.f32.mxu0 0.0
    %157 = vmatmul.mubr.f32.gmra.mxu0 %v67
    %v158 = vpop.f32.mrf.mxu0
    %v159 = vadd.f32 %v90, %v158
    %v160 = vpop.f32.mrf.mxu0
    %161 = vmatprep.mubr.f32.mxu0 0.0
    %162 = vmatmul.mubr.f32.gmra.mxu0 %v68
    %v163 = vpop.f32.mrf.mxu0
    %v164 = vadd.f32 %v90, %v163
    %v165 = vpop.f32.mrf.mxu0
    %166 = vdwg.mxu0
    %v167 = vmul.f32 %v159, 0.5
    %v168 = vmul.f32 %v164, 0.5
    %v169 = vmul.f32 %v159, 0.70710677
    %v170 = vmul.f32 %v164, 0.70710677
    %v171 = verf.f32.pop %v169
    %v172 = verf.f32.pop %v170
    %v173 = vadd.f32 %v171, 1.0
    %v174 = vadd.f32 %v172, 1.0
    %v175 = vmul.f32 %v167, %v173
    %v176 = vmul.f32 %v168, %v174
    %v177 = vld [vmem:[#allocation4] sm:$0xff]
    %v178 = vld [vmem:[#allocation4 + $0x8] sm:$0xff]
    %v179 = vld [vmem:[#allocation4 + $0x10] sm:$0xff]
    %v180 = vld [vmem:[#allocation4 + $0x18] sm:$0xff]
    %v181 = vld [vmem:[#allocation4 + $0x20] sm:$0xff]
    %v182 = vld [vmem:[#allocation4 + $0x28] sm:$0xff]
    %v183 = vld [vmem:[#allocation4 + $0x30] sm:$0xff]
    %v184 = vld [vmem:[#allocation4 + $0x38] sm:$0xff]
    %v185 = vld [vmem:[#allocation4 + $0x40] sm:$0xff]
    %v186 = vld [vmem:[#allocation4 + $0x48] sm:$0xff]
    %v187 = vld [vmem:[#allocation4 + $0x50] sm:$0xff]
    %v188 = vld [vmem:[#allocation4 + $0x58] sm:$0xff]
    %v189 = vld [vmem:[#allocation4 + $0x60] sm:$0xff]
    %v190 = vld [vmem:[#allocation4 + $0x68] sm:$0xff]
    %v191 = vld [vmem:[#allocation4 + $0x70] sm:$0xff]
    %v192 = vld [vmem:[#allocation4 + $0x78] sm:$0xff]
    %v193 = vld [vmem:[%s4] sm:$0x1]
    %v195 = vlaneseq
    %v196 = vshrl.u32 %v195, 7
    %v197 = vsub.s32 0, %v196
    %v198 = vrot.slane %v193, %v197
    %200 = vmatprep.subr.mxu0 0.0
    %201 = vmatpush1.msra.mxu0 %v192
    %202 = vmatprep.subr.mxu0 0.0
    %203 = vmatpush1.msra.mxu0 %v191
    %204 = vmatprep.subr.mxu0 0.0
    %205 = vmatpush1.msra.mxu0 %v190
    %206 = vmatprep.subr.mxu0 0.0
    %207 = vmatpush1.msra.mxu0 %v189
    %208 = vmatprep.subr.mxu0 0.0
    %209 = vmatpush1.msra.mxu0 %v188
    %210 = vmatprep.subr.mxu0 0.0
    %211 = vmatpush1.msra.mxu0 %v187
    %212 = vmatprep.subr.mxu0 0.0
    %213 = vmatpush1.msra.mxu0 %v186
    %214 = vmatprep.subr.mxu0 0.0
    %215 = vmatpush1.msra.mxu0 %v185
    %216 = vmatprep.subr.mxu0 0.0
    %217 = vmatpush1.msra.mxu0 %v184
    %218 = vmatprep.subr.mxu0 0.0
    %219 = vmatpush1.msra.mxu0 %v183
    %220 = vmatprep.subr.mxu0 0.0
    %221 = vmatpush1.msra.mxu0 %v182
    %222 = vmatprep.subr.mxu0 0.0
    %223 = vmatpush1.msra.mxu0 %v181
    %224 = vmatprep.subr.mxu0 0.0
    %225 = vmatpush1.msra.mxu0 %v180
    %226 = vmatprep.subr.mxu0 0.0
    %227 = vmatpush1.msra.mxu0 %v179
    %228 = vmatprep.subr.mxu0 0.0
    %229 = vmatpush1.msra.mxu0 %v178
    %230 = vmatprep.subr.mxu0 0.0
    %231 = vmatpush1.msra.mxu0 %v177
    %232 = vmatprep.subr.mxu0 0.0
    %233 = vmatpush2.msra.mxu0 0.0
    %234 = vmatprep.subr.mxu0 0.0
    %235 = vmatpush2.msra.mxu0 0.0
    %236 = vmatprep.subr.mxu0 0.0
    %237 = vmatpush2.msra.mxu0 0.0
    %238 = vmatprep.subr.mxu0 0.0
    %239 = vmatpush2.msra.mxu0 0.0
    %240 = vmatprep.subr.mxu0 0.0
    %241 = vmatpush2.msra.mxu0 0.0
    %242 = vmatprep.subr.mxu0 0.0
    %243 = vmatpush2.msra.mxu0 0.0
    %244 = vmatprep.subr.mxu0 0.0
    %245 = vmatpush2.msra.mxu0 0.0
    %246 = vmatprep.subr.mxu0 0.0
    %247 = vmatpush2.msra.mxu0 0.0
    %248 = vmatprep.subr.mxu0 0.0
    %249 = vmatpush2.msra.mxu0 0.0
    %250 = vmatprep.subr.mxu0 0.0
    %251 = vmatpush2.msra.mxu0 0.0
    %252 = vmatprep.subr.mxu0 0.0
    %253 = vmatpush2.msra.mxu0 0.0
    %254 = vmatprep.subr.mxu0 0.0
    %255 = vmatpush2.msra.mxu0 0.0
    %256 = vmatprep.subr.mxu0 0.0
    %257 = vmatpush2.msra.mxu0 0.0
    %258 = vmatprep.subr.mxu0 0.0
    %259 = vmatpush2.msra.mxu0 0.0
    %260 = vmatprep.subr.mxu0 0.0
    %261 = vmatpush2.msra.mxu0 0.0
    %262 = vmatprep.subr.mxu0 0.0
    %263 = vmatpush2.msra.mxu0 0.0
    %264 = vmatprep.mubr.f32.mxu0 0.0
    %265 = vmatmul.mubr.f32.gmra.mxu0 %v175
    %v266 = vpop.f32.mrf.mxu0
    %v267 = vadd.f32 %v198, %v266
    %v268 = vpop.f32.mrf.mxu0
    %269 = vmatprep.mubr.f32.mxu0 0.0
    %270 = vmatmul.mubr.f32.gmra.mxu0 %v176
    %v271 = vpop.f32.mrf.mxu0
    %v272 = vadd.f32 %v198, %v271
    %v273 = vpop.f32.mrf.mxu0
    %274 = vdwg.mxu0
    %v275 = vmul.f32 %v267, 0.5
    %v276 = vmul.f32 %v272, 0.5
    %v277 = vmul.f32 %v267, 0.70710677
    %v278 = vmul.f32 %v272, 0.70710677
    %v279 = verf.f32.pop %v277
    %v280 = verf.f32.pop %v278
    %v281 = vadd.f32 %v279, 1.0
    %v282 = vadd.f32 %v280, 1.0
    %v283 = vmul.f32 %v275, %v281
    %v284 = vmul.f32 %v276, %v282
    %v285 = vld [vmem:[#allocation6] sm:$0xff]
    %v286 = vld [vmem:[#allocation6 + $0x8] sm:$0xff]
    %v287 = vld [vmem:[#allocation6 + $0x10] sm:$0xff]
    %v288 = vld [vmem:[#allocation6 + $0x18] sm:$0xff]
    %v289 = vld [vmem:[#allocation6 + $0x20] sm:$0xff]
    %v290 = vld [vmem:[#allocation6 + $0x28] sm:$0xff]
    %v291 = vld [vmem:[#allocation6 + $0x30] sm:$0xff]
    %v292 = vld [vmem:[#allocation6 + $0x38] sm:$0xff]
    %v293 = vld [vmem:[#allocation6 + $0x40] sm:$0xff]
    %v294 = vld [vmem:[#allocation6 + $0x48] sm:$0xff]
    %v295 = vld [vmem:[#allocation6 + $0x50] sm:$0xff]
    %v296 = vld [vmem:[#allocation6 + $0x58] sm:$0xff]
    %v297 = vld [vmem:[#allocation6 + $0x60] sm:$0xff]
    %v298 = vld [vmem:[#allocation6 + $0x68] sm:$0xff]
    %v299 = vld [vmem:[#allocation6 + $0x70] sm:$0xff]
    %v300 = vld [vmem:[#allocation6 + $0x78] sm:$0xff]
    %v301 = vld [vmem:[%s6] sm:$0x1]
    %v303 = vlaneseq
    %v304 = vshrl.u32 %v303, 7
    %v305 = vsub.s32 0, %v304
    %v306 = vrot.slane %v301, %v305
    %308 = vmatprep.subr.mxu0 0.0
    %309 = vmatpush1.msra.mxu0 %v300
    %310 = vmatprep.subr.mxu0 0.0
    %311 = vmatpush1.msra.mxu0 %v299
    %312 = vmatprep.subr.mxu0 0.0
    %313 = vmatpush1.msra.mxu0 %v298
    %314 = vmatprep.subr.mxu0 0.0
    %315 = vmatpush1.msra.mxu0 %v297
    %316 = vmatprep.subr.mxu0 0.0
    %317 = vmatpush1.msra.mxu0 %v296
    %318 = vmatprep.subr.mxu0 0.0
    %319 = vmatpush1.msra.mxu0 %v295
    %320 = vmatprep.subr.mxu0 0.0
    %321 = vmatpush1.msra.mxu0 %v294
    %322 = vmatprep.subr.mxu0 0.0
    %323 = vmatpush1.msra.mxu0 %v293
    %324 = vmatprep.subr.mxu0 0.0
    %325 = vmatpush1.msra.mxu0 %v292
    %326 = vmatprep.subr.mxu0 0.0
    %327 = vmatpush1.msra.mxu0 %v291
    %328 = vmatprep.subr.mxu0 0.0
    %329 = vmatpush1.msra.mxu0 %v290
    %330 = vmatprep.subr.mxu0 0.0
    %331 = vmatpush1.msra.mxu0 %v289
    %332 = vmatprep.subr.mxu0 0.0
    %333 = vmatpush1.msra.mxu0 %v288
    %334 = vmatprep.subr.mxu0 0.0
    %335 = vmatpush1.msra.mxu0 %v287
    %336 = vmatprep.subr.mxu0 0.0
    %337 = vmatpush1.msra.mxu0 %v286
    %338 = vmatprep.subr.mxu0 0.0
    %339 = vmatpush1.msra.mxu0 %v285
    %340 = vmatprep.subr.mxu0 0.0
    %341 = vmatpush2.msra.mxu0 0.0
    %342 = vmatprep.subr.mxu0 0.0
    %343 = vmatpush2.msra.mxu0 0.0
    %344 = vmatprep.subr.mxu0 0.0
    %345 = vmatpush2.msra.mxu0 0.0
    %346 = vmatprep.subr.mxu0 0.0
    %347 = vmatpush2.msra.mxu0 0.0
    %348 = vmatprep.subr.mxu0 0.0
    %349 = vmatpush2.msra.mxu0 0.0
    %350 = vmatprep.subr.mxu0 0.0
    %351 = vmatpush2.msra.mxu0 0.0
    %352 = vmatprep.subr.mxu0 0.0
    %353 = vmatpush2.msra.mxu0 0.0
    %354 = vmatprep.subr.mxu0 0.0
    %355 = vmatpush2.msra.mxu0 0.0
    %356 = vmatprep.subr.mxu0 0.0
    %357 = vmatpush2.msra.mxu0 0.0
    %358 = vmatprep.subr.mxu0 0.0
    %359 = vmatpush2.msra.mxu0 0.0
    %360 = vmatprep.subr.mxu0 0.0
    %361 = vmatpush2.msra.mxu0 0.0
    %362 = vmatprep.subr.mxu0 0.0
    %363 = vmatpush2.msra.mxu0 0.0
    %364 = vmatprep.subr.mxu0 0.0
    %365 = vmatpush2.msra.mxu0 0.0
    %366 = vmatprep.subr.mxu0 0.0
    %367 = vmatpush2.msra.mxu0 0.0
    %368 = vmatprep.subr.mxu0 0.0
    %369 = vmatpush2.msra.mxu0 0.0
    %370 = vmatprep.subr.mxu0 0.0
    %371 = vmatpush2.msra.mxu0 0.0
    %372 = vmatprep.mubr.f32.mxu0 0.0
    %373 = vmatmul.mubr.f32.gmra.mxu0 %v283
    %v374 = vpop.f32.mrf.mxu0
    %v375 = vadd.f32 %v306, %v374
    %v376 = vpop.f32.mrf.mxu0
    %377 = vmatprep.mubr.f32.mxu0 0.0
    %378 = vmatmul.mubr.f32.gmra.mxu0 %v284
    %v379 = vpop.f32.mrf.mxu0
    %v380 = vadd.f32 %v306, %v379
    %v381 = vpop.f32.mrf.mxu0
    %382 = vdwg.mxu0
    %v383 = vxor.u32 %v375, 2147483648
    %v384 = vxor.u32 %v380, 2147483648
    %v385 = vmul.f32 %v383, 1.442695
    %v386 = vpow.pop %v385
    %v387 = vmul.f32 %v384, 1.442695
    %v388 = vpow.pop %v387
    %v389 = vadd.f32 %v386, 1.0
    %v390 = vadd.f32 %v388, 1.0
    %v391 = vrcp.pop %v389
    %v392 = vmul.f32 1.0, %v391
    %v393 = vrcp.pop %v390
    %v394 = vmul.f32 1.0, %v393
    %395 = vst [vmem:[%s7] sm:$0xff] %v392
    %396 = vst [vmem:[%s7 + $0x8] sm:$0xff] %v394
    // Predicated region
    $region42: #{_fwd.1} parent=1 // pred_check
      _
    $region43: #{_fwd.1} parent=1 // pred_check_branch
      %398 = sbr.rel (0) target = $region45
    $region44: #{_fwd.1} parent=1 // pred_region
      _
    $region45: #{_fwd.1} parent=1 // pred_fallthru
      _
    // Predicated region
    $region46: #{_fwd.1} parent=1 // pred_check
      _
    $region47: #{_fwd.1} parent=1 // pred_check_branch
      %400 = sbr.rel (0) target = $region49
    $region48: #{_fwd.1} parent=1 // pred_region
      _
    $region49: #{_fwd.1} parent=1 // pred_fallthru
      _
    %401 = vsyncpa [#allocation3], 1
    %402 = vsyncpa [#allocation5], 1

</llo_original>
